<compile_context>
chip_gen: v5e
topology: v5e:2x2
jax: 0.10.0
libtpu: 0.0.40
codegen_flags: <defaults>
</compile_context>

<pallas_src>
import jax
import jax.numpy as jnp
from jax.experimental import pallas as pl
from jax.experimental.pallas import tpu as pltpu


def _regularizer_kernel(x_ref, w1_ref, b1_ref, w2_ref, b2_ref, w3_ref, b3_ref,
                        o_ref):
    """Fused packed 3-layer MLP on a (tm, pack*H2) row tile -> (tm, pack)."""
    x = x_ref[...]                                               # (tm, P*H2) bf16

    # Layer 1: block-diag Linear(P*H2 -> P*H3), f32 accum, f32 bias + sigmoid.
    h1 = jnp.dot(x, w1_ref[...], preferred_element_type=jnp.float32)
    h1 = jax.nn.sigmoid(h1 + b1_ref[...])                        # (tm, P*H3) f32

    # Layer 2: block-diag Linear(P*H3 -> P*H1) + sigmoid.
    h2 = jnp.dot(h1.astype(w2_ref.dtype), w2_ref[...],
                 preferred_element_type=jnp.float32)
    h2 = jax.nn.sigmoid(h2 + b2_ref[...])                        # (tm, P*H1) f32

    # Output layer: block-diag Linear(P*H1 -> P) as a plain MXU matmul.
    out = jnp.dot(h2.astype(w3_ref.dtype), w3_ref[...],
                  preferred_element_type=jnp.float32)            # (tm, P)
    o_ref[...] = (out + b3_ref[0, 0]).astype(o_ref.dtype)


def _round_up(n, m):
    return ((n + m - 1) // m) * m


def _block_diag(w, pack):
    """Block-diagonal tiling of a small weight matrix (built once, a few KiB)."""
    d_in, d_out = w.shape
    out = jnp.zeros((pack * d_in, pack * d_out), w.dtype)
    for k in range(pack):
        out = out.at[k * d_in:(k + 1) * d_in, k * d_out:(k + 1) * d_out].set(w)
    return out


def regularizer_forward(x, w1, b1, w2, b2, w3, b3, *, max_tile=1024,
                        target_steps=8):
    """x: (N, H2). Weights W_k: (in, out). Biases b_k: (1, out). Returns (N, 1)."""
    N, H2 = x.shape
    H3 = w1.shape[1]
    H1 = w2.shape[1]

    # Rows packed per 128-lane vreg row (4 for this module's 16/32-wide dims).
    pack = max(1, 128 // max(H1, H2, H3))

    # Pack `pack` batch rows per input row: (N, H2) -> (n_rows, pack*H2).
    # Pads by <= pack-1 rows, and only when N % pack != 0 (no tile-multiple
    # padding of the whole array -- ragged tiles are handled by the grid).
    n_rows = pl.cdiv(N, pack)
    n_pad = n_rows * pack
    if n_pad != N:
        x = jnp.pad(x, ((0, n_pad - N), (0, 0)))
    xp = x.reshape(n_rows, pack * H2).astype(jnp.bfloat16)

    # Block-diagonal packed weights / tiled biases.  Matmul operands in bf16,
    # bias / accumulation path in f32.
    w1p = _block_diag(jnp.asarray(w1, jnp.float32), pack).astype(jnp.bfloat16)
    w2p = _block_diag(jnp.asarray(w2, jnp.float32), pack).astype(jnp.bfloat16)
    w3p = _block_diag(jnp.asarray(w3, jnp.float32).reshape(H1, 1),
                      pack).astype(jnp.bfloat16)
    b1p = jnp.tile(jnp.asarray(b1, jnp.float32).reshape(1, H3), (1, pack))
    b2p = jnp.tile(jnp.asarray(b2, jnp.float32).reshape(1, H1), (1, pack))
    b3s = jnp.asarray(b3, jnp.float32).reshape(1, 1)             # scalar -> SMEM

    # Packed-row tile: aim for ~target_steps grid steps for large N (so both
    # v7x TensorCores get >= 2 pipelined steps each), clamped to [128, max_tile]
    # sublanes.  VMEM use stays ~1.5 MiB, far under every generation's limit.
    tm = _round_up(pl.cdiv(n_rows, target_steps), 8)
    tm = max(128, min(tm, max_tile))
    grid = (pl.cdiv(n_rows, tm),)

    out = pl.pallas_call(
        _regularizer_kernel,
        out_shape=jax.ShapeDtypeStruct((n_rows, pack), jnp.float32),
        grid_spec=pltpu.PrefetchScalarGridSpec(
            num_scalar_prefetch=0,
            grid=grid,
            in_specs=[
                pl.BlockSpec((tm, pack * H2), lambda i: (i, 0)),         # x rows
                pl.BlockSpec((pack * H2, pack * H3), lambda i: (0, 0)),  # W1
                pl.BlockSpec((1, pack * H3), lambda i: (0, 0)),          # b1
                pl.BlockSpec((pack * H3, pack * H1), lambda i: (0, 0)),  # W2
                pl.BlockSpec((1, pack * H1), lambda i: (0, 0)),          # b2
                pl.BlockSpec((pack * H1, pack), lambda i: (0, 0)),       # W3
                pl.BlockSpec(memory_space=pltpu.MemorySpace.SMEM),       # b3
            ],
            out_specs=pl.BlockSpec((tm, pack), lambda i: (i, 0)),
        ),
        compiler_params=pltpu.CompilerParams(
            dimension_semantics=("parallel",)),
    )(xp, w1p, b1p, w2p, b2p, w3p, b3s)

    # (n_rows, pack) row-major == original row order; drop pack padding rows.
    return out.reshape(n_pad, 1)[:N]


def regularizer_reference(x, w1, b1, w2, b2, w3, b3):
    h1 = jax.nn.sigmoid(x @ w1 + b1)
    h2 = jax.nn.sigmoid(h1 @ w2 + b2)
    return h2 @ w3 + b3


if __name__ == "__main__":
    # Shapes implied by the module: inputs (N, hidden_dim2) -> output (N, 1).
    hidden_dim1, hidden_dim2, hidden_dim3 = 32, 32, 16
    N = 50  # deliberately ragged: not a multiple of the pack (4) or the tile

    key = jax.random.PRNGKey(0)
    k_x, k_w1, k_w2, k_w3 = jax.random.split(key, 4)

    x = jax.random.normal(k_x, (N, hidden_dim2), dtype=jnp.float32)

    # Deterministic init mirroring the PyTorch module:
    #   weights ~ N(0, 0.001), biases = 0
    # (stored transposed: (in_features, out_features) so forward is x @ W + b).
    w1 = 0.001 * jax.random.normal(k_w1, (hidden_dim2, hidden_dim3), jnp.float32)
    b1 = jnp.zeros((1, hidden_dim3), jnp.float32)
    w2 = 0.001 * jax.random.normal(k_w2, (hidden_dim3, hidden_dim1), jnp.float32)
    b2 = jnp.zeros((1, hidden_dim1), jnp.float32)
    w3 = 0.001 * jax.random.normal(k_w3, (hidden_dim1, 1), jnp.float32)
    b3 = jnp.zeros((1, 1), jnp.float32)

    # jit so the wrapper prep (pad/reshape/bf16 cast/block-diag) fuses into a
    # single cheap pass ahead of the pallas_call.
    fwd = jax.jit(regularizer_forward)
    out = jax.block_until_ready(fwd(x, w1, b1, w2, b2, w3, b3))

    ref = regularizer_reference(x, w1, b1, w2, b2, w3, b3)
    assert out.shape == (N, 1), out.shape
    err = jnp.max(jnp.abs(out - ref))
    # bf16 matmul operands -> looser tolerance than the old all-f32 check.
    assert jnp.allclose(out, ref, atol=1e-3, rtol=1e-2), f"max abs err = {err}"

    print("KERNEL_OK")
</pallas_src>

<mosaic_0001>
module attributes {stable_mosaic.version = 11 : i64} {
  func.func @_regularizer_kernel(%arg0: i32, %arg1: memref<128x128xbf16, #tpu.memory_space<vmem>>, %arg2: memref<128x64xbf16, #tpu.memory_space<vmem>>, %arg3: memref<1x64xf32, #tpu.memory_space<vmem>>, %arg4: memref<64x128xbf16, #tpu.memory_space<vmem>>, %arg5: memref<1x128xf32, #tpu.memory_space<vmem>>, %arg6: memref<128x4xbf16, #tpu.memory_space<vmem>>, %arg7: memref<1x1xf32, #tpu.memory_space<smem>>, %arg8: memref<128x4xf32, #tpu.memory_space<vmem>>) attributes {dimension_semantics = [#tpu.dimension_semantics<parallel>], iteration_bounds = array<i64: 1>, scalar_prefetch = 0 : i64, scratch_operands = 0 : i64, tpu.core_type = #tpu.core_type<tc>, window_params = [{transform_indices = @transform_0, window_bounds = array<i64: 128, 128>}, {pipeline_mode = #tpu.pipeline_mode<synchronous>, transform_indices = @transform_1, window_bounds = array<i64: 128, 64>}, {pipeline_mode = #tpu.pipeline_mode<synchronous>, transform_indices = @transform_2, window_bounds = array<i64: 1, 64>}, {pipeline_mode = #tpu.pipeline_mode<synchronous>, transform_indices = @transform_3, window_bounds = array<i64: 64, 128>}, {pipeline_mode = #tpu.pipeline_mode<synchronous>, transform_indices = @transform_4, window_bounds = array<i64: 1, 128>}, {pipeline_mode = #tpu.pipeline_mode<synchronous>, transform_indices = @transform_5, window_bounds = array<i64: 128, 4>}, {transform_indices = @transform_6, window_bounds = array<i64: 1, 1>}, {transform_indices = @transform_7, window_bounds = array<i64: 128, 4>}]} {
    %c0 = arith.constant 0 : index
    %c0_0 = arith.constant 0 : index
    %0 = vector.load %arg1[%c0, %c0_0] : memref<128x128xbf16, #tpu.memory_space<vmem>>, vector<128x128xbf16>
    %c0_1 = arith.constant 0 : index
    %c0_2 = arith.constant 0 : index
    %1 = vector.load %arg2[%c0_1, %c0_2] : memref<128x64xbf16, #tpu.memory_space<vmem>>, vector<128x64xbf16>
    %cst = arith.constant dense<0.000000e+00> : vector<128x64xf32>
    %2 = tpu.matmul %0, %1, %cst {dimension_numbers = #tpu.dot_dimension_numbers<[1], [0], [0], [1], [0, 0, 1, 1], [], []>} : vector<128x128xbf16>, vector<128x64xbf16>, vector<128x64xf32> -> vector<128x64xf32>
    %c0_3 = arith.constant 0 : index
    %c0_4 = arith.constant 0 : index
    %3 = vector.load %arg3[%c0_3, %c0_4] : memref<1x64xf32, #tpu.memory_space<vmem>>, vector<1x64xf32>
    %4 = vector.broadcast %3 : vector<1x64xf32> to vector<128x64xf32>
    %5 = arith.addf %2, %4 : vector<128x64xf32>
    %6 = arith.negf %5 : vector<128x64xf32>
    %7 = math.exp %6 : vector<128x64xf32>
    %cst_5 = arith.constant 1.000000e+00 : f32
    %8 = vector.broadcast %cst_5 : f32 to vector<128x64xf32>
    %9 = arith.addf %8, %7 : vector<128x64xf32>
    %10 = arith.divf %8, %9 : vector<128x64xf32>
    %11 = arith.truncf %10 : vector<128x64xf32> to vector<128x64xbf16>
    %c0_6 = arith.constant 0 : index
    %c0_7 = arith.constant 0 : index
    %12 = vector.load %arg4[%c0_6, %c0_7] : memref<64x128xbf16, #tpu.memory_space<vmem>>, vector<64x128xbf16>
    %cst_8 = arith.constant dense<0.000000e+00> : vector<128x128xf32>
    %13 = tpu.matmul %11, %12, %cst_8 {dimension_numbers = #tpu.dot_dimension_numbers<[1], [0], [0], [1], [0, 0, 1, 1], [], []>} : vector<128x64xbf16>, vector<64x128xbf16>, vector<128x128xf32> -> vector<128x128xf32>
    %c0_9 = arith.constant 0 : index
    %c0_10 = arith.constant 0 : index
    %14 = vector.load %arg5[%c0_9, %c0_10] : memref<1x128xf32, #tpu.memory_space<vmem>>, vector<1x128xf32>
    %15 = vector.broadcast %14 : vector<1x128xf32> to vector<128x128xf32>
    %16 = arith.addf %13, %15 : vector<128x128xf32>
    %17 = arith.negf %16 : vector<128x128xf32>
    %18 = math.exp %17 : vector<128x128xf32>
    %cst_11 = arith.constant 1.000000e+00 : f32
    %19 = vector.broadcast %cst_11 : f32 to vector<128x128xf32>
    %20 = arith.addf %19, %18 : vector<128x128xf32>
    %21 = arith.divf %19, %20 : vector<128x128xf32>
    %22 = arith.truncf %21 : vector<128x128xf32> to vector<128x128xbf16>
    %c0_12 = arith.constant 0 : index
    %c0_13 = arith.constant 0 : index
    %23 = vector.load %arg6[%c0_12, %c0_13] : memref<128x4xbf16, #tpu.memory_space<vmem>>, vector<128x4xbf16>
    %cst_14 = arith.constant dense<0.000000e+00> : vector<128x4xf32>
    %24 = tpu.matmul %22, %23, %cst_14 {dimension_numbers = #tpu.dot_dimension_numbers<[1], [0], [0], [1], [0, 0, 1, 1], [], []>} : vector<128x128xbf16>, vector<128x4xbf16>, vector<128x4xf32> -> vector<128x4xf32>
    %c0_15 = arith.constant 0 : index
    %c0_16 = arith.constant 0 : index
    %25 = memref.load %arg7[%c0_15, %c0_16] : memref<1x1xf32, #tpu.memory_space<smem>>
    %26 = vector.broadcast %25 : f32 to vector<128x4xf32>
    %27 = arith.addf %24, %26 : vector<128x4xf32>
    %c0_17 = arith.constant 0 : index
    %c0_18 = arith.constant 0 : index
    %28 = vector.load %arg8[%c0_17, %c0_18] : memref<128x4xf32, #tpu.memory_space<vmem>>, vector<128x4xf32>
    tpu.vector_store %arg8[%c0_17, %c0_18], %27 {strides = array<i32>} : memref<128x4xf32, #tpu.memory_space<vmem>>, vector<128x4xf32>,
    return
  }
  func.func @transform_0(%arg0: i32) -> (i32, i32) {
    %c0_i32 = arith.constant 0 : i32
    %c0_i32_0 = arith.constant 0 : i32
    return %arg0, %c0_i32 : i32, i32
  }
  func.func @transform_1(%arg0: i32) -> (i32, i32) {
    %c0_i32 = arith.constant 0 : i32
    %c0_i32_0 = arith.constant 0 : i32
    %c0_i32_1 = arith.constant 0 : i32
    return %c0_i32, %c0_i32_0 : i32, i32
  }
  func.func @transform_2(%arg0: i32) -> (i32, i32) {
    %c0_i32 = arith.constant 0 : i32
    %c0_i32_0 = arith.constant 0 : i32
    %c0_i32_1 = arith.constant 0 : i32
    return %c0_i32, %c0_i32_0 : i32, i32
  }
  func.func @transform_3(%arg0: i32) -> (i32, i32) {
    %c0_i32 = arith.constant 0 : i32
    %c0_i32_0 = arith.constant 0 : i32
    %c0_i32_1 = arith.constant 0 : i32
    return %c0_i32, %c0_i32_0 : i32, i32
  }
  func.func @transform_4(%arg0: i32) -> (i32, i32) {
    %c0_i32 = arith.constant 0 : i32
    %c0_i32_0 = arith.constant 0 : i32
    %c0_i32_1 = arith.constant 0 : i32
    return %c0_i32, %c0_i32_0 : i32, i32
  }
  func.func @transform_5(%arg0: i32) -> (i32, i32) {
    %c0_i32 = arith.constant 0 : i32
    %c0_i32_0 = arith.constant 0 : i32
    %c0_i32_1 = arith.constant 0 : i32
    return %c0_i32, %c0_i32_0 : i32, i32
  }
  func.func @transform_6(%arg0: i32) -> (i32, i32) {
    %c0_i32 = arith.constant 0 : i32
    %c0_i32_0 = arith.constant 0 : i32
    %c0_i32_1 = arith.constant 0 : i32
    return %c0_i32, %c0_i32_0 : i32, i32
  }
  func.func @transform_7(%arg0: i32) -> (i32, i32) {
    %c0_i32 = arith.constant 0 : i32
    %c0_i32_0 = arith.constant 0 : i32
    return %arg0, %c0_i32 : i32, i32
  }
}

</mosaic_0001>

<llo_original>
// kernel: regularizer_forward.1
$region0: #{regularizer_forward.1}
  #allocation0 [shape = 'u32[]', space=smem, size = 0x4, offset = 0x4, fixed_abs, tag = 'smem constant byte address 0x4 - core index']
  #allocation1 [shape = 'u32[72,128]{1,0:T(1,128)}', space=vmem, size = 0x9000, scoped, tag = 'internal scratch']
  #allocation2 [shape = 'f32[1,1]{1,0:T(1,128)S(6)}', space=smem, size = 0x200, scoped, tag = 'scoped memory for regularizer_forward.1']
  %s0 = inlined_call_operand.vmem [shape: bf16[13,128], index: 0, kind: input, shape index: {}]
  %s1 = inlined_call_operand.vmem [shape: bf16[128,64], index: 1, kind: input, shape index: {}]
  %s2 = inlined_call_operand.vmem [shape: f32[1,64], index: 2, kind: input, shape index: {}]
  %s3 = inlined_call_operand.vmem [shape: bf16[64,128], index: 3, kind: input, shape index: {}]
  %s4 = inlined_call_operand.vmem [shape: f32[1,128], index: 4, kind: input, shape index: {}]
  %s5 = inlined_call_operand.vmem [shape: bf16[128,4], index: 5, kind: input, shape index: {}]
  %s6 = inlined_call_operand.<no memory space> [shape: f32[1,1], index: 6, kind: input, shape index: {}]
  %s7 = inlined_call_operand.vmem [shape: f32[13,4], index: 7, kind: output, shape index: {}]
  %s8 = sld [smem:[#allocation0]]
  $region72: #{regularizer_forward.1} parent=0
    _
  %s10 = ssub.s32 1, %s8
  %s11 = scalar_select 0, %s10, %s8
  %12 = sst [smem:[#allocation2]] %s6
  $region1: #{regularizer_forward.1} parent=0
    #allocation3 [shape = 'u8[65536]{0}', space=vmem, size = 0x10000, scoped, tag = 'output window, operand 0, single buffered']
    // Predicated region
    $region2: #{regularizer_forward.1} parent=1 // pred_check
      _
    $region3: #{regularizer_forward.1} parent=1 // pred_check_branch
      %14 = sbr.rel (0) target = $region5
    $region4: #{regularizer_forward.1} parent=1 // pred_region
      _
    $region5: #{regularizer_forward.1} parent=1 // pred_fallthru
      _
    // Predicated region
    $region6: #{regularizer_forward.1} parent=1 // pred_check
      _
    $region7: #{regularizer_forward.1} parent=1 // pred_check_branch
      %16 = sbr.rel (0) target = $region9
    $region8: #{regularizer_forward.1} parent=1 // pred_region
      _
    $region9: #{regularizer_forward.1} parent=1 // pred_fallthru
      _
    // Predicated region
    $region10: #{regularizer_forward.1} parent=1 // pred_check
      _
    $region11: #{regularizer_forward.1} parent=1 // pred_check_branch
      %18 = sbr.rel (0) target = $region13
    $region12: #{regularizer_forward.1} parent=1 // pred_region
      _
    $region13: #{regularizer_forward.1} parent=1 // pred_fallthru
      _
    // Predicated region
    $region14: #{regularizer_forward.1} parent=1 // pred_check
      _
    $region15: #{regularizer_forward.1} parent=1 // pred_check_branch
      %20 = sbr.rel (0) target = $region17
    $region16: #{regularizer_forward.1} parent=1 // pred_region
      _
    $region17: #{regularizer_forward.1} parent=1 // pred_fallthru
      _
    // Predicated region
    $region18: #{regularizer_forward.1} parent=1 // pred_check
      _
    $region19: #{regularizer_forward.1} parent=1 // pred_check_branch
      %22 = sbr.rel (0) target = $region21
    $region20: #{regularizer_forward.1} parent=1 // pred_region
      _
    $region21: #{regularizer_forward.1} parent=1 // pred_fallthru
      _
    // Predicated region
    $region22: #{regularizer_forward.1} parent=1 // pred_check
      _
    $region23: #{regularizer_forward.1} parent=1 // pred_check_branch
      %24 = sbr.rel (0) target = $region25
    $region24: #{regularizer_forward.1} parent=1 // pred_region
      _
    $region25: #{regularizer_forward.1} parent=1 // pred_fallthru
      _
    // Predicated region
    $region26: #{regularizer_forward.1} parent=1 // pred_check
      _
    $region27: #{regularizer_forward.1} parent=1 // pred_check_branch
      %26 = sbr.rel (0) target = $region29
    $region28: #{regularizer_forward.1} parent=1 // pred_region
      _
    $region29: #{regularizer_forward.1} parent=1 // pred_fallthru
      _
    %v28 = vld [vmem:[%s0] sm:$0xf]
    %v29 = vld [vmem:[%s0 + $0x4] sm:$0xf]
    %v30 = vld [vmem:[%s0 + $0x8] sm:$0xf]
    %v31 = vld [vmem:[%s0 + $0xc] sm:$0xf]
    %v32 = vld [vmem:[%s0 + $0x10] sm:$0xf]
    %v33 = vld [vmem:[%s0 + $0x14] sm:$0xf]
    %v34 = vld [vmem:[%s0 + $0x18] sm:$0xf]
    %v35 = vld [vmem:[%s0 + $0x1c] sm:$0xf]
    %v36 = vld [vmem:[%s0 + $0x20] sm:$0xf]
    %v37 = vld [vmem:[%s0 + $0x24] sm:$0xf]
    %v38 = vld [vmem:[%s0 + $0x28] sm:$0xf]
    %v39 = vld [vmem:[%s0 + $0x2c] sm:$0xf]
    %v40 = vld [vmem:[%s0 + $0x30] sm:$0xf]
    %v41 = vld [vmem:[%s0 + $0x34] sm:$0xf]
    %v42 = vld [vmem:[%s0 + $0x38] sm:$0xf]
    %v43 = vld [vmem:[%s0 + $0x3c] sm:$0xf]
    %v44 = vld [vmem:[%s1] sm:$0xf]
    %v45 = vld [vmem:[%s1 + $0x4] sm:$0xf]
    %v46 = vld [vmem:[%s1 + $0x8] sm:$0xf]
    %v47 = vld [vmem:[%s1 + $0xc] sm:$0xf]
    %v48 = vld [vmem:[%s1 + $0x10] sm:$0xf]
    %v49 = vld [vmem:[%s1 + $0x14] sm:$0xf]
    %v50 = vld [vmem:[%s1 + $0x18] sm:$0xf]
    %v51 = vld [vmem:[%s1 + $0x1c] sm:$0xf]
    %v52 = vld [vmem:[%s1 + $0x20] sm:$0xf]
    %v53 = vld [vmem:[%s1 + $0x24] sm:$0xf]
    %v54 = vld [vmem:[%s1 + $0x28] sm:$0xf]
    %v55 = vld [vmem:[%s1 + $0x2c] sm:$0xf]
    %v56 = vld [vmem:[%s1 + $0x30] sm:$0xf]
    %v57 = vld [vmem:[%s1 + $0x34] sm:$0xf]
    %v58 = vld [vmem:[%s1 + $0x38] sm:$0xf]
    %v59 = vld [vmem:[%s1 + $0x3c] sm:$0xf]
    %v60 = vld [vmem:[%s2] sm:$0x1]
    %v62 = vperm.slane %v60, 0
    %v80 = vunpack.c.l.b16 %v28
    %v81 = vunpack.c.l.b16 %v29
    %v82 = vunpack.c.l.b16 %v30
    %v83 = vunpack.c.l.b16 %v31
    %v84 = vunpack.c.l.b16 %v32
    %v85 = vunpack.c.l.b16 %v33
    %v86 = vunpack.c.l.b16 %v34
    %v87 = vunpack.c.l.b16 %v35
    %v88 = vunpack.c.l.b16 %v36
    %v89 = vunpack.c.l.b16 %v37
    %v90 = vunpack.c.l.b16 %v38
    %v91 = vunpack.c.l.b16 %v39
    %v92 = vunpack.c.l.b16 %v40
    %v93 = vunpack.c.l.b16 %v41
    %v94 = vunpack.c.l.b16 %v42
    %v95 = vunpack.c.l.b16 %v43
    %v96 = vpack.c.b16 %v81, %v80
    %v97 = vpack.c.b16 %v83, %v82
    %v98 = vpack.c.b16 %v85, %v84
    %v99 = vpack.c.b16 %v87, %v86
    %v100 = vpack.c.b16 %v89, %v88
    %v101 = vpack.c.b16 %v91, %v90
    %v102 = vpack.c.b16 %v93, %v92
    %v103 = vpack.c.b16 %v95, %v94
    %v128 = vunpack.c.l.b16 %v44
    %v129 = vunpack.c.l.b16 %v45
    %v130 = vunpack.c.l.b16 %v46
    %v131 = vunpack.c.l.b16 %v47
    %v132 = vunpack.c.l.b16 %v48
    %v133 = vunpack.c.l.b16 %v49
    %v134 = vunpack.c.l.b16 %v50
    %v135 = vunpack.c.l.b16 %v51
    %v136 = vunpack.c.l.b16 %v52
    %v137 = vunpack.c.l.b16 %v53
    %v138 = vunpack.c.l.b16 %v54
    %v139 = vunpack.c.l.b16 %v55
    %v140 = vunpack.c.l.b16 %v56
    %v141 = vunpack.c.l.b16 %v57
    %v142 = vunpack.c.l.b16 %v58
    %v143 = vunpack.c.l.b16 %v59
    %v144 = vpack.c.b16 %v129, %v128
    %v145 = vpack.c.b16 %v131, %v130
    %v146 = vpack.c.b16 %v133, %v132
    %v147 = vpack.c.b16 %v135, %v134
    %v148 = vpack.c.b16 %v137, %v136
    %v149 = vpack.c.b16 %v139, %v138
    %v150 = vpack.c.b16 %v141, %v140
    %v151 = vpack.c.b16 %v143, %v142
    %160 = vmatpush.bf16.msra.mxu0 %v151
    %161 = vmatpush.bf16.msra.mxu0 %v150
    %162 = vmatpush.bf16.msra.mxu0 %v149
    %163 = vmatpush.bf16.msra.mxu0 %v148
    %164 = vmatpush.bf16.msra.mxu0 %v147
    %165 = vmatpush.bf16.msra.mxu0 %v146
    %166 = vmatpush.bf16.msra.mxu0 %v145
    %167 = vmatpush.bf16.msra.mxu0 %v144
    %168 = vmatmul.bf16.gmra.mxu0 %v96
    %v169 = vpop.f32.mrf.mxu0
    %v170 = vadd.f32 %v62, %v169
    %v171 = vpop.f32.mrf.mxu0
    %v172 = vadd.f32 %v62, %v171
    %173 = vmatmul.bf16.gmra.mxu0 %v97
    %v174 = vpop.f32.mrf.mxu0
    %v175 = vadd.f32 %v62, %v174
    %v176 = vpop.f32.mrf.mxu0
    %v177 = vadd.f32 %v62, %v176
    %178 = vmatmul.bf16.gmra.mxu0 %v98
    %v179 = vpop.f32.mrf.mxu0
    %v180 = vadd.f32 %v62, %v179
    %v181 = vpop.f32.mrf.mxu0
    %v182 = vadd.f32 %v62, %v181
    %183 = vmatmul.bf16.gmra.mxu0 %v99
    %v184 = vpop.f32.mrf.mxu0
    %v185 = vadd.f32 %v62, %v184
    %v186 = vpop.f32.mrf.mxu0
    %v187 = vadd.f32 %v62, %v186
    %188 = vmatmul.bf16.gmra.mxu0 %v100
    %v189 = vpop.f32.mrf.mxu0
    %v190 = vadd.f32 %v62, %v189
    %v191 = vpop.f32.mrf.mxu0
    %v192 = vadd.f32 %v62, %v191
    %193 = vmatmul.bf16.gmra.mxu0 %v101
    %v194 = vpop.f32.mrf.mxu0
    %v195 = vadd.f32 %v62, %v194
    %v196 = vpop.f32.mrf.mxu0
    %v197 = vadd.f32 %v62, %v196
    %198 = vmatmul.bf16.gmra.mxu0 %v102
    %v199 = vpop.f32.mrf.mxu0
    %v200 = vadd.f32 %v62, %v199
    %v201 = vpop.f32.mrf.mxu0
    %v202 = vadd.f32 %v62, %v201
    %203 = vmatmul.bf16.gmra.mxu0 %v103
    %v204 = vpop.f32.mrf.mxu0
    %v205 = vadd.f32 %v62, %v204
    %v206 = vpop.f32.mrf.mxu0
    %v207 = vadd.f32 %v62, %v206
    %208 = vdwg.mxu0
    %v209 = vxor.u32 %v170, 2147483648
    %v210 = vxor.u32 %v172, 2147483648
    %v211 = vxor.u32 %v175, 2147483648
    %v212 = vxor.u32 %v177, 2147483648
    %v213 = vxor.u32 %v180, 2147483648
    %v214 = vxor.u32 %v182, 2147483648
    %v215 = vxor.u32 %v185, 2147483648
    %v216 = vxor.u32 %v187, 2147483648
    %v217 = vxor.u32 %v190, 2147483648
    %v218 = vxor.u32 %v192, 2147483648
    %v219 = vxor.u32 %v195, 2147483648
    %v220 = vxor.u32 %v197, 2147483648
    %v221 = vxor.u32 %v200, 2147483648
    %v222 = vxor.u32 %v202, 2147483648
    %v223 = vxor.u32 %v205, 2147483648
    %v224 = vxor.u32 %v207, 2147483648
    %v225 = vmul.f32 %v209, 1.442695
    %v226 = vpow.pop %v225
    %v227 = vmul.f32 %v210, 1.442695
    %v228 = vpow.pop %v227
    %v229 = vmul.f32 %v211, 1.442695
    %v230 = vpow.pop %v229
    %v231 = vmul.f32 %v212, 1.442695
    %v232 = vpow.pop %v231
    %v233 = vmul.f32 %v213, 1.442695
    %v234 = vpow.pop %v233
    %v235 = vmul.f32 %v214, 1.442695
    %v236 = vpow.pop %v235
    %v237 = vmul.f32 %v215, 1.442695
    %v238 = vpow.pop %v237
    %v239 = vmul.f32 %v216, 1.442695
    %v240 = vpow.pop %v239
    %v241 = vmul.f32 %v217, 1.442695
    %v242 = vpow.pop %v241
    %v243 = vmul.f32 %v218, 1.442695
    %v244 = vpow.pop %v243
    %v245 = vmul.f32 %v219, 1.442695
    %v246 = vpow.pop %v245
    %v247 = vmul.f32 %v220, 1.442695
    %v248 = vpow.pop %v247
    %v249 = vmul.f32 %v221, 1.442695
    %v250 = vpow.pop %v249
    %v251 = vmul.f32 %v222, 1.442695
    %v252 = vpow.pop %v251
    %v253 = vmul.f32 %v223, 1.442695
    %v254 = vpow.pop %v253
    %v255 = vmul.f32 %v224, 1.442695
    %v256 = vpow.pop %v255
    %v257 = vadd.f32 %v226, 1.0
    %v258 = vadd.f32 %v228, 1.0
    %v259 = vadd.f32 %v230, 1.0
    %v260 = vadd.f32 %v232, 1.0
    %v261 = vadd.f32 %v234, 1.0
    %v262 = vadd.f32 %v236, 1.0
    %v263 = vadd.f32 %v238, 1.0
    %v264 = vadd.f32 %v240, 1.0
    %v265 = vadd.f32 %v242, 1.0
    %v266 = vadd.f32 %v244, 1.0
    %v267 = vadd.f32 %v246, 1.0
    %v268 = vadd.f32 %v248, 1.0
    %v269 = vadd.f32 %v250, 1.0
    %v270 = vadd.f32 %v252, 1.0
    %v271 = vadd.f32 %v254, 1.0
    %v272 = vadd.f32 %v256, 1.0
    %v273 = vrcp.pop %v257
    %v274 = vmul.f32 %v257, %v273
    %v275 = vsub.f32 1.0, %v274
    %v276 = vmul.f32 %v273, %v275
    %v277 = vadd.f32 %v273, %v276
    %vm278 = vweird.f32 %v257
    %vm279 = vweird.f32 %v273
    %vm280 = vmor %vm278, %vm279
    %v281 = vsel %vm280, %v273, %v277
    %v282 = vand.u32 2147483647, %v257
    %vm283 = vcmp.eq.f32.partialorder %v282, 8.507059e+37
    %v284 = vand.u32 %v257, 2147483648
    %v285 = vor.u32 1.1754944e-38, %v284
    %v286 = vsel %vm283, %v285, %v281
    %v287 = vmul.f32 1.0, %v286
    %v288 = vrcp.pop %v258
    %v289 = vmul.f32 %v258, %v288
    %v290 = vsub.f32 1.0, %v289
    %v291 = vmul.f32 %v288, %v290
    %v292 = vadd.f32 %v288, %v291
    %vm293 = vweird.f32 %v258
    %vm294 = vweird.f32 %v288
    %vm295 = vmor %vm293, %vm294
    %v296 = vsel %vm295, %v288, %v292
    %v297 = vand.u32 2147483647, %v258
    %vm298 = vcmp.eq.f32.partialorder %v297, 8.507059e+37
    %v299 = vand.u32 %v258, 2147483648
    %v300 = vor.u32 1.1754944e-38, %v299
    %v301 = vsel %vm298, %v300, %v296
    %v302 = vmul.f32 1.0, %v301
    %v303 = vrcp.pop %v259
    %v304 = vmul.f32 %v259, %v303
    %v305 = vsub.f32 1.0, %v304
    %v306 = vmul.f32 %v303, %v305
    %v307 = vadd.f32 %v303, %v306
    %vm308 = vweird.f32 %v259
    %vm309 = vweird.f32 %v303
    %vm310 = vmor %vm308, %vm309
    %v311 = vsel %vm310, %v303, %v307
    %v312 = vand.u32 2147483647, %v259
    %vm313 = vcmp.eq.f32.partialorder %v312, 8.507059e+37
    %v314 = vand.u32 %v259, 2147483648
    %v315 = vor.u32 1.1754944e-38, %v314
    %v316 = vsel %vm313, %v315, %v311
    %v317 = vmul.f32 1.0, %v316
    %v318 = vrcp.pop %v260
    %v319 = vmul.f32 %v260, %v318
    %v320 = vsub.f32 1.0, %v319
    %v321 = vmul.f32 %v318, %v320
    %v322 = vadd.f32 %v318, %v321
    %vm323 = vweird.f32 %v260
    %vm324 = vweird.f32 %v318
    %vm325 = vmor %vm323, %vm324
    %v326 = vsel %vm325, %v318, %v322
    %v327 = vand.u32 2147483647, %v260
    %vm328 = vcmp.eq.f32.partialorder %v327, 8.507059e+37
    %v329 = vand.u32 %v260, 2147483648
    %v330 = vor.u32 1.1754944e-38, %v329
    %v331 = vsel %vm328, %v330, %v326
    %v332 = vmul.f32 1.0, %v331
    %v333 = vrcp.pop %v261
    %v334 = vmul.f32 %v261, %v333
    %v335 = vsub.f32 1.0, %v334
    %v336 = vmul.f32 %v333, %v335
    %v337 = vadd.f32 %v333, %v336
    %vm338 = vweird.f32 %v261
    %vm339 = vweird.f32 %v333
    %vm340 = vmor %vm338, %vm339
    %v341 = vsel %vm340, %v333, %v337
    %v342 = vand.u32 2147483647, %v261
    %vm343 = vcmp.eq.f32.partialorder %v342, 8.507059e+37
    %v344 = vand.u32 %v261, 2147483648
    %v345 = vor.u32 1.1754944e-38, %v344
    %v346 = vsel %vm343, %v345, %v341
    %v347 = vmul.f32 1.0, %v346
    %v348 = vrcp.pop %v262
    %v349 = vmul.f32 %v262, %v348
    %v350 = vsub.f32 1.0, %v349
    %v351 = vmul.f32 %v348, %v350
    %v352 = vadd.f32 %v348, %v351
    %vm353 = vweird.f32 %v262
    %vm354 = vweird.f32 %v348
    %vm355 = vmor %vm353, %vm354
    %v356 = vsel %vm355, %v348, %v352
    %v357 = vand.u32 2147483647, %v262
    %vm358 = vcmp.eq.f32.partialorder %v357, 8.507059e+37
    %v359 = vand.u32 %v262, 2147483648
    %v360 = vor.u32 1.1754944e-38, %v359
    %v361 = vsel %vm358, %v360, %v356
    %v362 = vmul.f32 1.0, %v361
    %v363 = vrcp.pop %v263
    %v364 = vmul.f32 %v263, %v363
    %v365 = vsub.f32 1.0, %v364
    %v366 = vmul.f32 %v363, %v365
    %v367 = vadd.f32 %v363, %v366
    %vm368 = vweird.f32 %v263
    %vm369 = vweird.f32 %v363
    %vm370 = vmor %vm368, %vm369
    %v371 = vsel %vm370, %v363, %v367
    %v372 = vand.u32 2147483647, %v263
    %vm373 = vcmp.eq.f32.partialorder %v372, 8.507059e+37
    %v374 = vand.u32 %v263, 2147483648
    %v375 = vor.u32 1.1754944e-38, %v374
    %v376 = vsel %vm373, %v375, %v371
    %v377 = vmul.f32 1.0, %v376
    %v378 = vrcp.pop %v264
    %v379 = vmul.f32 %v264, %v378
    %v380 = vsub.f32 1.0, %v379
    %v381 = vmul.f32 %v378, %v380
    %v382 = vadd.f32 %v378, %v381
    %vm383 = vweird.f32 %v264
    %vm384 = vweird.f32 %v378
    %vm385 = vmor %vm383, %vm384
    %v386 = vsel %vm385, %v378, %v382
    %v387 = vand.u32 2147483647, %v264
    %vm388 = vcmp.eq.f32.partialorder %v387, 8.507059e+37
    %v389 = vand.u32 %v264, 2147483648
    %v390 = vor.u32 1.1754944e-38, %v389
    %v391 = vsel %vm388, %v390, %v386
    %v392 = vmul.f32 1.0, %v391
    %v393 = vrcp.pop %v265
    %v394 = vmul.f32 %v265, %v393
    %v395 = vsub.f32 1.0, %v394
    %v396 = vmul.f32 %v393, %v395
    %v397 = vadd.f32 %v393, %v396
    %vm398 = vweird.f32 %v265
    %vm399 = vweird.f32 %v393
    %vm400 = vmor %vm398, %vm399
    %v401 = vsel %vm400, %v393, %v397
    %v402 = vand.u32 2147483647, %v265
    %vm403 = vcmp.eq.f32.partialorder %v402, 8.507059e+37
    %v404 = vand.u32 %v265, 2147483648
    %v405 = vor.u32 1.1754944e-38, %v404
    %v406 = vsel %vm403, %v405, %v401
    %v407 = vmul.f32 1.0, %v406
    %v408 = vrcp.pop %v266
    %v409 = vmul.f32 %v266, %v408
    %v410 = vsub.f32 1.0, %v409
    %v411 = vmul.f32 %v408, %v410
    %v412 = vadd.f32 %v408, %v411
    %vm413 = vweird.f32 %v266
    %vm414 = vweird.f32 %v408
    %vm415 = vmor %vm413, %vm414
    %v416 = vsel %vm415, %v408, %v412
    %v417 = vand.u32 2147483647, %v266
    %vm418 = vcmp.eq.f32.partialorder %v417, 8.507059e+37
    %v419 = vand.u32 %v266, 2147483648
    %v420 = vor.u32 1.1754944e-38, %v419
    %v421 = vsel %vm418, %v420, %v416
    %v422 = vmul.f32 1.0, %v421
    %v423 = vrcp.pop %v267
    %v424 = vmul.f32 %v267, %v423
    %v425 = vsub.f32 1.0, %v424
    %v426 = vmul.f32 %v423, %v425
    %v427 = vadd.f32 %v423, %v426
    %vm428 = vweird.f32 %v267
    %vm429 = vweird.f32 %v423
    %vm430 = vmor %vm428, %vm429
    %v431 = vsel %vm430, %v423, %v427
    %v432 = vand.u32 2147483647, %v267
    %vm433 = vcmp.eq.f32.partialorder %v432, 8.507059e+37
    %v434 = vand.u32 %v267, 2147483648
    %v435 = vor.u32 1.1754944e-38, %v434
    %v436 = vsel %vm433, %v435, %v431
    %v437 = vmul.f32 1.0, %v436
    %v438 = vrcp.pop %v268
    %v439 = vmul.f32 %v268, %v438
    %v440 = vsub.f32 1.0, %v439
    %v441 = vmul.f32 %v438, %v440
    %v442 = vadd.f32 %v438, %v441
    %vm443 = vweird.f32 %v268
    %vm444 = vweird.f32 %v438
    %vm445 = vmor %vm443, %vm444
    %v446 = vsel %vm445, %v438, %v442
    %v447 = vand.u32 2147483647, %v268
    %vm448 = vcmp.eq.f32.partialorder %v447, 8.507059e+37
    %v449 = vand.u32 %v268, 2147483648
    %v450 = vor.u32 1.1754944e-38, %v449
    %v451 = vsel %vm448, %v450, %v446
    %v452 = vmul.f32 1.0, %v451
    %v453 = vrcp.pop %v269
    %v454 = vmul.f32 %v269, %v453
    %v455 = vsub.f32 1.0, %v454
    %v456 = vmul.f32 %v453, %v455
    %v457 = vadd.f32 %v453, %v456
    %vm458 = vweird.f32 %v269
    %vm459 = vweird.f32 %v453
    %vm460 = vmor %vm458, %vm459
    %v461 = vsel %vm460, %v453, %v457
    %v462 = vand.u32 2147483647, %v269
    %vm463 = vcmp.eq.f32.partialorder %v462, 8.507059e+37
    %v464 = vand.u32 %v269, 2147483648
    %v465 = vor.u32 1.1754944e-38, %v464
    %v466 = vsel %vm463, %v465, %v461
    %v467 = vmul.f32 1.0, %v466
    %v468 = vrcp.pop %v270
    %v469 = vmul.f32 %v270, %v468
    %v470 = vsub.f32 1.0, %v469
    %v471 = vmul.f32 %v468, %v470
    %v472 = vadd.f32 %v468, %v471
    %vm473 = vweird.f32 %v270
    %vm474 = vweird.f32 %v468
    %vm475 = vmor %vm473, %vm474
    %v476 = vsel %vm475, %v468, %v472
    %v477 = vand.u32 2147483647, %v270
    %vm478 = vcmp.eq.f32.partialorder %v477, 8.507059e+37
    %v479 = vand.u32 %v270, 2147483648
    %v480 = vor.u32 1.1754944e-38, %v479
    %v481 = vsel %vm478, %v480, %v476
    %v482 = vmul.f32 1.0, %v481
    %v483 = vrcp.pop %v271
    %v484 = vmul.f32 %v271, %v483
    %v485 = vsub.f32 1.0, %v484
    %v486 = vmul.f32 %v483, %v485
    %v487 = vadd.f32 %v483, %v486
    %vm488 = vweird.f32 %v271
    %vm489 = vweird.f32 %v483
    %vm490 = vmor %vm488, %vm489
    %v491 = vsel %vm490, %v483, %v487
    %v492 = vand.u32 2147483647, %v271
    %vm493 = vcmp.eq.f32.partialorder %v492, 8.507059e+37
    %v494 = vand.u32 %v271, 2147483648
    %v495 = vor.u32 1.1754944e-38, %v494
    %v496 = vsel %vm493, %v495, %v491
    %v497 = vmul.f32 1.0, %v496
    %v498 = vrcp.pop %v272
    %v499 = vmul.f32 %v272, %v498
    %v500 = vsub.f32 1.0, %v499
    %v501 = vmul.f32 %v498, %v500
    %v502 = vadd.f32 %v498, %v501
    %vm503 = vweird.f32 %v272
    %vm504 = vweird.f32 %v498
    %vm505 = vmor %vm503, %vm504
    %v506 = vsel %vm505, %v498, %v502
    %v507 = vand.u32 2147483647, %v272
    %vm508 = vcmp.eq.f32.partialorder %v507, 8.507059e+37
    %v509 = vand.u32 %v272, 2147483648
    %v510 = vor.u32 1.1754944e-38, %v509
    %v511 = vsel %vm508, %v510, %v506
    %v512 = vmul.f32 1.0, %v511
    %v513 = vpack.c.bf16 %v302, %v287
    %v514 = vpack.c.bf16 %v332, %v317
    %v515 = vpack.c.bf16 %v362, %v347
    %v516 = vpack.c.bf16 %v392, %v377
    %v517 = vpack.c.bf16 %v422, %v407
    %v518 = vpack.c.bf16 %v452, %v437
    %v519 = vpack.c.bf16 %v482, %v467
    %v520 = vpack.c.bf16 %v512, %v497
    %v521 = vld [vmem:[%s3] sm:$0xf]
    %v522 = vld [vmem:[%s3 + $0x4] sm:$0xf]
    %v523 = vld [vmem:[%s3 + $0x8] sm:$0xf]
    %v524 = vld [vmem:[%s3 + $0xc] sm:$0xf]
    %v525 = vld [vmem:[%s3 + $0x10] sm:$0xf]
    %v526 = vld [vmem:[%s3 + $0x14] sm:$0xf]
    %v527 = vld [vmem:[%s3 + $0x18] sm:$0xf]
    %v528 = vld [vmem:[%s3 + $0x1c] sm:$0xf]
    %v529 = vld [vmem:[%s4] sm:$0x1]
    %v531 = vperm.slane %v529, 0
    %v541 = vunpack.c.l.b16 %v521
    %v542 = vunpack.c.l.b16 %v522
    %v543 = vunpack.c.l.b16 %v523
    %v544 = vunpack.c.l.b16 %v524
    %v545 = vunpack.c.l.b16 %v525
    %v546 = vunpack.c.l.b16 %v526
    %v547 = vunpack.c.l.b16 %v527
    %v548 = vunpack.c.l.b16 %v528
    %v549 = vpack.c.b16 %v542, %v541
    %v550 = vpack.c.b16 %v544, %v543
    %v551 = vpack.c.b16 %v546, %v545
    %v552 = vpack.c.b16 %v548, %v547
    %vm557 = vcmask 523264
    %v559 = vsel %vm557, %v513, 0
    %v562 = vsel %vm557, %v514, 0
    %v565 = vsel %vm557, %v515, 0
    %v568 = vsel %vm557, %v516, 0
    %v571 = vsel %vm557, %v517, 0
    %v574 = vsel %vm557, %v518, 0
    %v577 = vsel %vm557, %v519, 0
    %v580 = vsel %vm557, %v520, 0
    %582 = vmatpush.bf16.msra.mxu0 0
    %583 = vmatpush.bf16.msra.mxu0 0
    %584 = vmatpush.bf16.msra.mxu0 0
    %585 = vmatpush.bf16.msra.mxu0 0
    %586 = vmatpush.bf16.msra.mxu0 %v552
    %587 = vmatpush.bf16.msra.mxu0 %v551
    %588 = vmatpush.bf16.msra.mxu0 %v550
    %589 = vmatpush.bf16.msra.mxu0 %v549
    %590 = vmatmul.bf16.gmra.mxu0 %v559
    %v591 = vpop.f32.mrf.mxu0
    %v592 = vadd.f32 %v531, %v591
    %v593 = vpop.f32.mrf.mxu0
    %v594 = vadd.f32 %v531, %v593
    %595 = vmatmul.bf16.gmra.mxu0 %v562
    %v596 = vpop.f32.mrf.mxu0
    %v597 = vadd.f32 %v531, %v596
    %v598 = vpop.f32.mrf.mxu0
    %v599 = vadd.f32 %v531, %v598
    %600 = vmatmul.bf16.gmra.mxu0 %v565
    %v601 = vpop.f32.mrf.mxu0
    %v602 = vadd.f32 %v531, %v601
    %v603 = vpop.f32.mrf.mxu0
    %v604 = vadd.f32 %v531, %v603
    %605 = vmatmul.bf16.gmra.mxu0 %v568
    %v606 = vpop.f32.mrf.mxu0
    %v607 = vadd.f32 %v531, %v606
    %v608 = vpop.f32.mrf.mxu0
    %v609 = vadd.f32 %v531, %v608
    %610 = vmatmul.bf16.gmra.mxu0 %v571
    %v611 = vpop.f32.mrf.mxu0
    %v612 = vadd.f32 %v531, %v611
    %v613 = vpop.f32.mrf.mxu0
    %v614 = vadd.f32 %v531, %v613
    %615 = vmatmul.bf16.gmra.mxu0 %v574
    %v616 = vpop.f32.mrf.mxu0
    %v617 = vadd.f32 %v531, %v616
    %v618 = vpop.f32.mrf.mxu0
    %v619 = vadd.f32 %v531, %v618
    %620 = vmatmul.bf16.gmra.mxu0 %v577
    %v621 = vpop.f32.mrf.mxu0
    %v622 = vadd.f32 %v531, %v621
    %v623 = vpop.f32.mrf.mxu0
    %v624 = vadd.f32 %v531, %v623
    %625 = vmatmul.bf16.gmra.mxu0 %v580
    %v626 = vpop.f32.mrf.mxu0
    %v627 = vadd.f32 %v531, %v626
    %v628 = vpop.f32.mrf.mxu0
    %v629 = vadd.f32 %v531, %v628
    %630 = vdwg.mxu0
    %v631 = vxor.u32 %v592, 2147483648
    %v632 = vxor.u32 %v594, 2147483648
    %v633 = vxor.u32 %v597, 2147483648
    %v634 = vxor.u32 %v599, 2147483648
    %v635 = vxor.u32 %v602, 2147483648
    %v636 = vxor.u32 %v604, 2147483648
    %v637 = vxor.u32 %v607, 2147483648
    %v638 = vxor.u32 %v609, 2147483648
    %v639 = vxor.u32 %v612, 2147483648
    %v640 = vxor.u32 %v614, 2147483648
    %v641 = vxor.u32 %v617, 2147483648
    %v642 = vxor.u32 %v619, 2147483648
    %v643 = vxor.u32 %v622, 2147483648
    %v644 = vxor.u32 %v624, 2147483648
    %v645 = vxor.u32 %v627, 2147483648
    %v646 = vxor.u32 %v629, 2147483648
    %v647 = vmul.f32 %v631, 1.442695
    %v648 = vpow.pop %v647
    %v649 = vmul.f32 %v632, 1.442695
    %v650 = vpow.pop %v649
    %v651 = vmul.f32 %v633, 1.442695
    %v652 = vpow.pop %v651
    %v653 = vmul.f32 %v634, 1.442695
    %v654 = vpow.pop %v653
    %v655 = vmul.f32 %v635, 1.442695
    %v656 = vpow.pop %v655
    %v657 = vmul.f32 %v636, 1.442695
    %v658 = vpow.pop %v657
    %v659 = vmul.f32 %v637, 1.442695
    %v660 = vpow.pop %v659
    %v661 = vmul.f32 %v638, 1.442695
    %v662 = vpow.pop %v661
    %v663 = vmul.f32 %v639, 1.442695
    %v664 = vpow.pop %v663
    %v665 = vmul.f32 %v640, 1.442695
    %v666 = vpow.pop %v665
    %v667 = vmul.f32 %v641, 1.442695
    %v668 = vpow.pop %v667
    %v669 = vmul.f32 %v642, 1.442695
    %v670 = vpow.pop %v669
    %v671 = vmul.f32 %v643, 1.442695
    %v672 = vpow.pop %v671
    %v673 = vmul.f32 %v644, 1.442695
    %v674 = vpow.pop %v673
    %v675 = vmul.f32 %v645, 1.442695
    %v676 = vpow.pop %v675
    %v677 = vmul.f32 %v646, 1.442695
    %v678 = vpow.pop %v677
    %v679 = vadd.f32 %v648, 1.0
    %v680 = vadd.f32 %v650, 1.0
    %v681 = vadd.f32 %v652, 1.0
    %v682 = vadd.f32 %v654, 1.0
    %v683 = vadd.f32 %v656, 1.0
    %v684 = vadd.f32 %v658, 1.0
    %v685 = vadd.f32 %v660, 1.0
    %v686 = vadd.f32 %v662, 1.0
    %v687 = vadd.f32 %v664, 1.0
    %v688 = vadd.f32 %v666, 1.0
    %v689 = vadd.f32 %v668, 1.0
    %v690 = vadd.f32 %v670, 1.0
    %v691 = vadd.f32 %v672, 1.0
    %v692 = vadd.f32 %v674, 1.0
    %v693 = vadd.f32 %v676, 1.0
    %v694 = vadd.f32 %v678, 1.0
    %v695 = vrcp.pop %v679
    %v696 = vmul.f32 %v679, %v695
    %v697 = vsub.f32 1.0, %v696
    %v698 = vmul.f32 %v695, %v697
    %v699 = vadd.f32 %v695, %v698
    %vm700 = vweird.f32 %v679
    %vm701 = vweird.f32 %v695
    %vm702 = vmor %vm700, %vm701
    %v703 = vsel %vm702, %v695, %v699
    %v704 = vand.u32 2147483647, %v679
    %vm705 = vcmp.eq.f32.partialorder %v704, 8.507059e+37
    %v706 = vand.u32 %v679, 2147483648
    %v707 = vor.u32 1.1754944e-38, %v706
    %v708 = vsel %vm705, %v707, %v703
    %v709 = vmul.f32 1.0, %v708
    %v710 = vrcp.pop %v680
    %v711 = vmul.f32 %v680, %v710
    %v712 = vsub.f32 1.0, %v711
    %v713 = vmul.f32 %v710, %v712
    %v714 = vadd.f32 %v710, %v713
    %vm715 = vweird.f32 %v680
    %vm716 = vweird.f32 %v710
    %vm717 = vmor %vm715, %vm716
    %v718 = vsel %vm717, %v710, %v714
    %v719 = vand.u32 2147483647, %v680
    %vm720 = vcmp.eq.f32.partialorder %v719, 8.507059e+37
    %v721 = vand.u32 %v680, 2147483648
    %v722 = vor.u32 1.1754944e-38, %v721
    %v723 = vsel %vm720, %v722, %v718
    %v724 = vmul.f32 1.0, %v723
    %v725 = vrcp.pop %v681
    %v726 = vmul.f32 %v681, %v725
    %v727 = vsub.f32 1.0, %v726
    %v728 = vmul.f32 %v725, %v727
    %v729 = vadd.f32 %v725, %v728
    %vm730 = vweird.f32 %v681
    %vm731 = vweird.f32 %v725
    %vm732 = vmor %vm730, %vm731
    %v733 = vsel %vm732, %v725, %v729
    %v734 = vand.u32 2147483647, %v681
    %vm735 = vcmp.eq.f32.partialorder %v734, 8.507059e+37
    %v736 = vand.u32 %v681, 2147483648
    %v737 = vor.u32 1.1754944e-38, %v736
    %v738 = vsel %vm735, %v737, %v733
    %v739 = vmul.f32 1.0, %v738
    %v740 = vrcp.pop %v682
    %v741 = vmul.f32 %v682, %v740
    %v742 = vsub.f32 1.0, %v741
    %v743 = vmul.f32 %v740, %v742
    %v744 = vadd.f32 %v740, %v743
    %vm745 = vweird.f32 %v682
    %vm746 = vweird.f32 %v740
    %vm747 = vmor %vm745, %vm746
    %v748 = vsel %vm747, %v740, %v744
    %v749 = vand.u32 2147483647, %v682
    %vm750 = vcmp.eq.f32.partialorder %v749, 8.507059e+37
    %v751 = vand.u32 %v682, 2147483648
    %v752 = vor.u32 1.1754944e-38, %v751
    %v753 = vsel %vm750, %v752, %v748
    %v754 = vmul.f32 1.0, %v753
    %v755 = vrcp.pop %v683
    %v756 = vmul.f32 %v683, %v755
    %v757 = vsub.f32 1.0, %v756
    %v758 = vmul.f32 %v755, %v757
    %v759 = vadd.f32 %v755, %v758
    %vm760 = vweird.f32 %v683
    %vm761 = vweird.f32 %v755
    %vm762 = vmor %vm760, %vm761
    %v763 = vsel %vm762, %v755, %v759
    %v764 = vand.u32 2147483647, %v683
    %vm765 = vcmp.eq.f32.partialorder %v764, 8.507059e+37
    %v766 = vand.u32 %v683, 2147483648
    %v767 = vor.u32 1.1754944e-38, %v766
    %v768 = vsel %vm765, %v767, %v763
    %v769 = vmul.f32 1.0, %v768
    %v770 = vrcp.pop %v684
    %v771 = vmul.f32 %v684, %v770
    %v772 = vsub.f32 1.0, %v771
    %v773 = vmul.f32 %v770, %v772
    %v774 = vadd.f32 %v770, %v773
    %vm775 = vweird.f32 %v684
    %vm776 = vweird.f32 %v770
    %vm777 = vmor %vm775, %vm776
    %v778 = vsel %vm777, %v770, %v774
    %v779 = vand.u32 2147483647, %v684
    %vm780 = vcmp.eq.f32.partialorder %v779, 8.507059e+37
    %v781 = vand.u32 %v684, 2147483648
    %v782 = vor.u32 1.1754944e-38, %v781
    %v783 = vsel %vm780, %v782, %v778
    %v784 = vmul.f32 1.0, %v783
    %v785 = vrcp.pop %v685
    %v786 = vmul.f32 %v685, %v785
    %v787 = vsub.f32 1.0, %v786
    %v788 = vmul.f32 %v785, %v787
    %v789 = vadd.f32 %v785, %v788
    %vm790 = vweird.f32 %v685
    %vm791 = vweird.f32 %v785
    %vm792 = vmor %vm790, %vm791
    %v793 = vsel %vm792, %v785, %v789
    %v794 = vand.u32 2147483647, %v685
    %vm795 = vcmp.eq.f32.partialorder %v794, 8.507059e+37
    %v796 = vand.u32 %v685, 2147483648
    %v797 = vor.u32 1.1754944e-38, %v796
    %v798 = vsel %vm795, %v797, %v793
    %v799 = vmul.f32 1.0, %v798
    %v800 = vrcp.pop %v686
    %v801 = vmul.f32 %v686, %v800
    %v802 = vsub.f32 1.0, %v801
    %v803 = vmul.f32 %v800, %v802
    %v804 = vadd.f32 %v800, %v803
    %vm805 = vweird.f32 %v686
    %vm806 = vweird.f32 %v800
    %vm807 = vmor %vm805, %vm806
    %v808 = vsel %vm807, %v800, %v804
    %v809 = vand.u32 2147483647, %v686
    %vm810 = vcmp.eq.f32.partialorder %v809, 8.507059e+37
    %v811 = vand.u32 %v686, 2147483648
    %v812 = vor.u32 1.1754944e-38, %v811
    %v813 = vsel %vm810, %v812, %v808
    %v814 = vmul.f32 1.0, %v813
    %v815 = vrcp.pop %v687
    %v816 = vmul.f32 %v687, %v815
    %v817 = vsub.f32 1.0, %v816
    %v818 = vmul.f32 %v815, %v817
    %v819 = vadd.f32 %v815, %v818
    %vm820 = vweird.f32 %v687
    %vm821 = vweird.f32 %v815
    %vm822 = vmor %vm820, %vm821
    %v823 = vsel %vm822, %v815, %v819
    %v824 = vand.u32 2147483647, %v687
    %vm825 = vcmp.eq.f32.partialorder %v824, 8.507059e+37
    %v826 = vand.u32 %v687, 2147483648
    %v827 = vor.u32 1.1754944e-38, %v826
    %v828 = vsel %vm825, %v827, %v823
    %v829 = vmul.f32 1.0, %v828
    %v830 = vrcp.pop %v688
    %v831 = vmul.f32 %v688, %v830
    %v832 = vsub.f32 1.0, %v831
    %v833 = vmul.f32 %v830, %v832
    %v834 = vadd.f32 %v830, %v833
    %vm835 = vweird.f32 %v688
    %vm836 = vweird.f32 %v830
    %vm837 = vmor %vm835, %vm836
    %v838 = vsel %vm837, %v830, %v834
    %v839 = vand.u32 2147483647, %v688
    %vm840 = vcmp.eq.f32.partialorder %v839, 8.507059e+37
    %v841 = vand.u32 %v688, 2147483648
    %v842 = vor.u32 1.1754944e-38, %v841
    %v843 = vsel %vm840, %v842, %v838
    %v844 = vmul.f32 1.0, %v843
    %v845 = vrcp.pop %v689
    %v846 = vmul.f32 %v689, %v845
    %v847 = vsub.f32 1.0, %v846
    %v848 = vmul.f32 %v845, %v847
    %v849 = vadd.f32 %v845, %v848
    %vm850 = vweird.f32 %v689
    %vm851 = vweird.f32 %v845
    %vm852 = vmor %vm850, %vm851
    %v853 = vsel %vm852, %v845, %v849
    %v854 = vand.u32 2147483647, %v689
    %vm855 = vcmp.eq.f32.partialorder %v854, 8.507059e+37
    %v856 = vand.u32 %v689, 2147483648
    %v857 = vor.u32 1.1754944e-38, %v856
    %v858 = vsel %vm855, %v857, %v853
    %v859 = vmul.f32 1.0, %v858
    %v860 = vrcp.pop %v690
    %v861 = vmul.f32 %v690, %v860
    %v862 = vsub.f32 1.0, %v861
    %v863 = vmul.f32 %v860, %v862
    %v864 = vadd.f32 %v860, %v863
    %vm865 = vweird.f32 %v690
    %vm866 = vweird.f32 %v860
    %vm867 = vmor %vm865, %vm866
    %v868 = vsel %vm867, %v860, %v864
    %v869 = vand.u32 2147483647, %v690
    %vm870 = vcmp.eq.f32.partialorder %v869, 8.507059e+37
    %v871 = vand.u32 %v690, 2147483648
    %v872 = vor.u32 1.1754944e-38, %v871
    %v873 = vsel %vm870, %v872, %v868
    %v874 = vmul.f32 1.0, %v873
    %v875 = vrcp.pop %v691
    %v876 = vmul.f32 %v691, %v875
    %v877 = vsub.f32 1.0, %v876
    %v878 = vmul.f32 %v875, %v877
    %v879 = vadd.f32 %v875, %v878
    %vm880 = vweird.f32 %v691
    %vm881 = vweird.f32 %v875
    %vm882 = vmor %vm880, %vm881
    %v883 = vsel %vm882, %v875, %v879
    %v884 = vand.u32 2147483647, %v691
    %vm885 = vcmp.eq.f32.partialorder %v884, 8.507059e+37
    %v886 = vand.u32 %v691, 2147483648
    %v887 = vor.u32 1.1754944e-38, %v886
    %v888 = vsel %vm885, %v887, %v883
    %v889 = vmul.f32 1.0, %v888
    %v890 = vrcp.pop %v692
    %v891 = vmul.f32 %v692, %v890
    %v892 = vsub.f32 1.0, %v891
    %v893 = vmul.f32 %v890, %v892
    %v894 = vadd.f32 %v890, %v893
    %vm895 = vweird.f32 %v692
    %vm896 = vweird.f32 %v890
    %vm897 = vmor %vm895, %vm896
    %v898 = vsel %vm897, %v890, %v894
    %v899 = vand.u32 2147483647, %v692
    %vm900 = vcmp.eq.f32.partialorder %v899, 8.507059e+37
    %v901 = vand.u32 %v692, 2147483648
    %v902 = vor.u32 1.1754944e-38, %v901
    %v903 = vsel %vm900, %v902, %v898
    %v904 = vmul.f32 1.0, %v903
    %v905 = vrcp.pop %v693
    %v906 = vmul.f32 %v693, %v905
    %v907 = vsub.f32 1.0, %v906
    %v908 = vmul.f32 %v905, %v907
    %v909 = vadd.f32 %v905, %v908
    %vm910 = vweird.f32 %v693
    %vm911 = vweird.f32 %v905
    %vm912 = vmor %vm910, %vm911
    %v913 = vsel %vm912, %v905, %v909
    %v914 = vand.u32 2147483647, %v693
    %vm915 = vcmp.eq.f32.partialorder %v914, 8.507059e+37
    %v916 = vand.u32 %v693, 2147483648
    %v917 = vor.u32 1.1754944e-38, %v916
    %v918 = vsel %vm915, %v917, %v913
    %v919 = vmul.f32 1.0, %v918
    %v920 = vrcp.pop %v694
    %v921 = vmul.f32 %v694, %v920
    %v922 = vsub.f32 1.0, %v921
    %v923 = vmul.f32 %v920, %v922
    %v924 = vadd.f32 %v920, %v923
    %vm925 = vweird.f32 %v694
    %vm926 = vweird.f32 %v920
    %vm927 = vmor %vm925, %vm926
    %v928 = vsel %vm927, %v920, %v924
    %v929 = vand.u32 2147483647, %v694
    %vm930 = vcmp.eq.f32.partialorder %v929, 8.507059e+37
    %v931 = vand.u32 %v694, 2147483648
    %v932 = vor.u32 1.1754944e-38, %v931
    %v933 = vsel %vm930, %v932, %v928
    %v934 = vmul.f32 1.0, %v933
    %v935 = vpack.c.bf16 %v724, %v709
    %v936 = vpack.c.bf16 %v754, %v739
    %v937 = vpack.c.bf16 %v784, %v769
    %v938 = vpack.c.bf16 %v814, %v799
    %v939 = vpack.c.bf16 %v844, %v829
    %v940 = vpack.c.bf16 %v874, %v859
    %v941 = vpack.c.bf16 %v904, %v889
    %v942 = vpack.c.bf16 %v934, %v919
    %v943 = vld [vmem:[%s5] sm:$0xf]
    %v944 = vld [vmem:[%s5 + $0x4] sm:$0xf]
    %v945 = vld [vmem:[%s5 + $0x8] sm:$0xf]
    %v946 = vld [vmem:[%s5 + $0xc] sm:$0xf]
    %v947 = vld [vmem:[%s5 + $0x10] sm:$0xf]
    %v948 = vld [vmem:[%s5 + $0x14] sm:$0xf]
    %v949 = vld [vmem:[%s5 + $0x18] sm:$0xf]
    %v950 = vld [vmem:[%s5 + $0x1c] sm:$0xf]
    %v951 = vld [vmem:[%s5 + $0x20] sm:$0xf]
    %v952 = vld [vmem:[%s5 + $0x24] sm:$0xf]
    %v953 = vld [vmem:[%s5 + $0x28] sm:$0xf]
    %v954 = vld [vmem:[%s5 + $0x2c] sm:$0xf]
    %v955 = vld [vmem:[%s5 + $0x30] sm:$0xf]
    %v956 = vld [vmem:[%s5 + $0x34] sm:$0xf]
    %v957 = vld [vmem:[%s5 + $0x38] sm:$0xf]
    %v958 = vld [vmem:[%s5 + $0x3c] sm:$0xf]
    %s959 = sld [smem:[#allocation2]]
    %v960 = vstv %s959
    %v977 = vunpack.c.l.b16 %v943
    %v978 = vunpack.c.l.b16 %v944
    %v979 = vunpack.c.l.b16 %v945
    %v980 = vunpack.c.l.b16 %v946
    %v981 = vunpack.c.l.b16 %v947
    %v982 = vunpack.c.l.b16 %v948
    %v983 = vunpack.c.l.b16 %v949
    %v984 = vunpack.c.l.b16 %v950
    %v985 = vunpack.c.l.b16 %v951
    %v986 = vunpack.c.l.b16 %v952
    %v987 = vunpack.c.l.b16 %v953
    %v988 = vunpack.c.l.b16 %v954
    %v989 = vunpack.c.l.b16 %v955
    %v990 = vunpack.c.l.b16 %v956
    %v991 = vunpack.c.l.b16 %v957
    %v992 = vunpack.c.l.b16 %v958
    %v993 = vpack.c.b16 %v978, %v977
    %v994 = vpack.c.b16 %v980, %v979
    %v995 = vpack.c.b16 %v982, %v981
    %v996 = vpack.c.b16 %v984, %v983
    %v997 = vpack.c.b16 %v986, %v985
    %v998 = vpack.c.b16 %v988, %v987
    %v999 = vpack.c.b16 %v990, %v989
    %v1000 = vpack.c.b16 %v992, %v991
    %1009 = vmatpush.bf16.msra.mxu0 %v1000
    %1010 = vmatpush.bf16.msra.mxu0 %v999
    %1011 = vmatpush.bf16.msra.mxu0 %v998
    %1012 = vmatpush.bf16.msra.mxu0 %v997
    %1013 = vmatpush.bf16.msra.mxu0 %v996
    %1014 = vmatpush.bf16.msra.mxu0 %v995
    %1015 = vmatpush.bf16.msra.mxu0 %v994
    %1016 = vmatpush.bf16.msra.mxu0 %v993
    %1017 = vmatmul.bf16.gmra.mxu0 %v935
    %v1018 = vpop.f32.mrf.mxu0
    %v1019 = vadd.f32 %v960, %v1018
    %v1020 = vpop.f32.mrf.mxu0
    %v1021 = vadd.f32 %v960, %v1020
    %1022 = vmatmul.bf16.gmra.mxu0 %v936
    %v1023 = vpop.f32.mrf.mxu0
    %v1024 = vadd.f32 %v960, %v1023
    %v1025 = vpop.f32.mrf.mxu0
    %v1026 = vadd.f32 %v960, %v1025
    %1027 = vmatmul.bf16.gmra.mxu0 %v937
    %v1028 = vpop.f32.mrf.mxu0
    %v1029 = vadd.f32 %v960, %v1028
    %v1030 = vpop.f32.mrf.mxu0
    %v1031 = vadd.f32 %v960, %v1030
    %1032 = vmatmul.bf16.gmra.mxu0 %v938
    %v1033 = vpop.f32.mrf.mxu0
    %v1034 = vadd.f32 %v960, %v1033
    %v1035 = vpop.f32.mrf.mxu0
    %v1036 = vadd.f32 %v960, %v1035
    %1037 = vmatmul.bf16.gmra.mxu0 %v939
    %v1038 = vpop.f32.mrf.mxu0
    %v1039 = vadd.f32 %v960, %v1038
    %v1040 = vpop.f32.mrf.mxu0
    %v1041 = vadd.f32 %v960, %v1040
    %1042 = vmatmul.bf16.gmra.mxu0 %v940
    %v1043 = vpop.f32.mrf.mxu0
    %v1044 = vadd.f32 %v960, %v1043
    %v1045 = vpop.f32.mrf.mxu0
    %v1046 = vadd.f32 %v960, %v1045
    %1047 = vmatmul.bf16.gmra.mxu0 %v941
    %v1048 = vpop.f32.mrf.mxu0
    %v1049 = vadd.f32 %v960, %v1048
    %v1050 = vpop.f32.mrf.mxu0
    %v1051 = vadd.f32 %v960, %v1050
    %1052 = vmatmul.bf16.gmra.mxu0 %v942
    %v1053 = vpop.f32.mrf.mxu0
    %v1054 = vadd.f32 %v960, %v1053
    %v1055 = vpop.f32.mrf.mxu0
    %v1056 = vadd.f32 %v960, %v1055
    %1057 = vdwg.mxu0
    %vm1058 = vcmask 31744
    %1059 = vst.msk [vmem:[#allocation3] sm:$0xff] %vm1058, %v1019
    %1060 = vst.msk [vmem:[#allocation3 + $0x8] sm:$0xff] %vm1058, %v1021
    %1061 = vst.msk [vmem:[#allocation3 + $0x10] sm:$0xff] %vm1058, %v1024
    %1062 = vst.msk [vmem:[#allocation3 + $0x18] sm:$0xff] %vm1058, %v1026
    %1063 = vst.msk [vmem:[#allocation3 + $0x20] sm:$0xff] %vm1058, %v1029
    %1064 = vst.msk [vmem:[#allocation3 + $0x28] sm:$0xff] %vm1058, %v1031
    %1065 = vst.msk [vmem:[#allocation3 + $0x30] sm:$0xff] %vm1058, %v1034
    %1066 = vst.msk [vmem:[#allocation3 + $0x38] sm:$0xff] %vm1058, %v1036
    %1067 = vst.msk [vmem:[#allocation3 + $0x40] sm:$0xff] %vm1058, %v1039
    %1068 = vst.msk [vmem:[#allocation3 + $0x48] sm:$0xff] %vm1058, %v1041
    %1069 = vst.msk [vmem:[#allocation3 + $0x50] sm:$0xff] %vm1058, %v1044
    %1070 = vst.msk [vmem:[#allocation3 + $0x58] sm:$0xff] %vm1058, %v1046
    %1071 = vst.msk [vmem:[#allocation3 + $0x60] sm:$0xff] %vm1058, %v1049
    %1072 = vst.msk [vmem:[#allocation3 + $0x68] sm:$0xff] %vm1058, %v1051
    %1073 = vst.msk [vmem:[#allocation3 + $0x70] sm:$0xff] %vm1058, %v1054
    %1074 = vst.msk [vmem:[#allocation3 + $0x78] sm:$0xff] %vm1058, %v1056
    // Predicated region
    $region30: #{regularizer_forward.1} parent=1 // pred_check
      _
    $region31: #{regularizer_forward.1} parent=1 // pred_check_branch
      %1076 = sbr.rel (0) target = $region33
    $region32: #{regularizer_forward.1} parent=1 // pred_region
      // Predicated region
      $region34: #{regularizer_forward.1} parent=32 // pred_check
        _
      $region35: #{regularizer_forward.1} parent=32 // pred_check_branch
        %1078 = sbr.rel (0) target = $region37
      $region36: #{regularizer_forward.1} parent=32 // pred_region
        // Predicated region
        $region38: #{regularizer_forward.1} parent=36 // pred_check
          _
        $region39: #{regularizer_forward.1} parent=36 // pred_check_branch
          %1080 = sbr.rel (0) target = $region41
        $region40: #{regularizer_forward.1} parent=36 // pred_region
          // Predicated region
          $region53: #{regularizer_forward.1} parent=40 // pred_check
            _
          $region54: #{regularizer_forward.1} parent=40 // pred_check_branch
            %1098 = sbr.rel (0) target = $region56
          $region55: #{regularizer_forward.1} parent=40 // pred_region
            loop: start=0, step=1, limit=1
            $region57: #{regularizer_forward.1} parent=55 // loop_pre_header
              _
            $region58: #{regularizer_forward.1} parent=55 // loop_header
              %s1100 = sphi 0, %s1104
              %p1101 = scmp.ge.s32.totalorder %s1100, 1
              %s1105 = sphi [#allocation3], [#allocation3]
              %s1106 = sphi %s7, %s7
            $region59: #{regularizer_forward.1} parent=55 // loop_header_branch
              %1103 = sbr.rel (%p1101) target = $region63
            $region60: #{regularizer_forward.1} parent=55 // loop_body
              %v1107 = vld [vmem:[%s1105] sm:$0xff]
              %1108 = vst [vmem:[%s1106] sm:$0xff] %v1107
              %v1109 = vld [vmem:[%s1105 + $0x8] sm:$0xff]
              %1110 = vst [vmem:[%s1106 + $0x8] sm:$0xff] %v1109
            $region61: #{regularizer_forward.1} parent=55 // loop_footer
              %s1104 = sadd.s32 1, %s1100
            $region62: #{regularizer_forward.1} parent=55 // loop_footer_branch
              %1099 = sbr.rel target = $region58
            $region63: #{regularizer_forward.1} parent=55 // loop_exit
              _
          $region56: #{regularizer_forward.1} parent=40 // pred_fallthru
            _
          // Predicated region
          $region64: #{regularizer_forward.1} parent=40 // pred_check
            _
          $region65: #{regularizer_forward.1} parent=40 // pred_check_branch
            %1112 = sbr.rel target = $region67
          $region66: #{regularizer_forward.1} parent=40 // pred_region
            _
          $region67: #{regularizer_forward.1} parent=40 // pred_fallthru
            _
        $region41: #{regularizer_forward.1} parent=36 // pred_fallthru
          _
        // Predicated region
        $region42: #{regularizer_forward.1} parent=36 // pred_check
          _
        $region43: #{regularizer_forward.1} parent=36 // pred_check_branch
          %1082 = sbr.rel target = $region45
        $region44: #{regularizer_forward.1} parent=36 // pred_region
          %s1084 = ssub.s32 256, 1
          loop: start=0, step=1, limit=1
          $region46: #{regularizer_forward.1} parent=44 // loop_pre_header
            _
          $region47: #{regularizer_forward.1} parent=44 // loop_header
            %s1086 = sphi 0, %s1090
            %p1087 = scmp.ge.s32.totalorder %s1086, 1
            %s1091 = sphi [#allocation3], [#allocation3]
            %s1092 = sphi %s7, %s7
          $region48: #{regularizer_forward.1} parent=44 // loop_header_branch
            %1089 = sbr.rel (%p1087) target = $region52
          $region49: #{regularizer_forward.1} parent=44 // loop_body
            %v1093 = vld [vmem:[%s1091] sm:%s1084]
            %1094 = vst [vmem:[%s1092] sm:%s1084] %v1093
            %v1095 = vld [vmem:[%s1091 + $0x8] sm:%s1084]
            %1096 = vst [vmem:[%s1092 + $0x8] sm:%s1084] %v1095
          $region50: #{regularizer_forward.1} parent=44 // loop_footer
            %s1090 = sadd.s32 1, %s1086
          $region51: #{regularizer_forward.1} parent=44 // loop_footer_branch
            %1085 = sbr.rel target = $region47
          $region52: #{regularizer_forward.1} parent=44 // loop_exit
            _
        $region45: #{regularizer_forward.1} parent=36 // pred_fallthru
          _
      $region37: #{regularizer_forward.1} parent=32 // pred_fallthru
        _
      %1113 = vnop
    $region33: #{regularizer_forward.1} parent=1 // pred_fallthru
      _
    // Predicated region
    $region68: #{regularizer_forward.1} parent=1 // pred_check
      _
    $region69: #{regularizer_forward.1} parent=1 // pred_check_branch
      %1115 = sbr.rel (0) target = $region71
    $region70: #{regularizer_forward.1} parent=1 // pred_region
      _
    $region71: #{regularizer_forward.1} parent=1 // pred_fallthru
      _

</llo_original>
